<compile_context>
chip_gen: v7x
topology: tpu7x:2x2x1
jax: 0.10.0
libtpu: 0.0.40
codegen_flags: <defaults>
</compile_context>

<pallas_src>
import functools

import jax
import jax.numpy as jnp
from jax.experimental import pallas as pl
from jax.experimental.pallas import tpu as pltpu


def _round_up(x, m):
    return ((x + m - 1) // m) * m


def _dice_sums_kernel(pred_ref, target_ref, inter_ref, psum_ref, tsum_ref,
                      inter_acc, psum_acc, tsum_acc, *,
                      d_total, td, tn, cw, kpp, needs_mask):
    """Per-row sum(sigmoid(p)*t), sum(sigmoid(p)), sum(t) over streamed D blocks.

    Grid = (parts, n_tiles, kpp): trailing axis streams D blocks ("arbitrary"),
    leading axes are parallel.  Accumulators are lane-wide (tn, 128) f32 in
    VMEM; the single cross-lane reduce happens once at finalize.
    """
    part = pl.program_id(0)
    k = pl.program_id(2)

    @pl.when(k == 0)
    def _init():
        inter_acc[...] = jnp.zeros_like(inter_acc)
        psum_acc[...] = jnp.zeros_like(psum_acc)
        tsum_acc[...] = jnp.zeros_like(tsum_acc)

    n_full = td // cw          # full lane-chunks per block
    n_groups = cw // 128       # 128-lane vreg groups per chunk

    def load(start, width):
        p = jax.nn.sigmoid(pred_ref[:, pl.ds(start, width)].astype(jnp.float32))
        t = target_ref[:, pl.ds(start, width)].astype(jnp.float32)
        return p, t

    def fold_lanes(x):
        # (tn, cw) -> (tn, 128): sum the cw//128 lane groups with vreg-aligned
        # VPU adds (no reshape / relayout, no XLU).
        r = x[:, 0:128]
        for g in range(1, n_groups):
            r = r + x[:, g * 128:(g + 1) * 128]
        return r

    def accumulate_chunks(mask_base):
        # mask_base: None -> every column valid; otherwise the global column
        # index of this block's first element (columns >= d_total are zeroed).
        def body(g, carry):
            off = pl.multiple_of(g * cw, cw)
            p, t = load(off, cw)
            if mask_base is not None:
                col = jax.lax.broadcasted_iota(jnp.int32, (tn, cw), 1)
                valid = (col + (mask_base + off)) < d_total
                p = jnp.where(valid, p, 0.0)
                t = jnp.where(valid, t, 0.0)
            inter_acc[...] += fold_lanes(p * t)
            psum_acc[...] += fold_lanes(p)
            tsum_acc[...] += fold_lanes(t)
            return carry

        jax.lax.fori_loop(0, n_full, body, 0, unroll=2)

    if needs_mask:
        # td is a multiple of cw here.  Only the block that crosses the D
        # boundary (or a clamped fully-out-of-range block) pays for masking.
        blk0 = (part * kpp + k) * td          # intended global start column

        @pl.when(blk0 + td <= d_total)
        def _interior():
            accumulate_chunks(None)

        @pl.when(blk0 + td > d_total)
        def _edge():
            accumulate_chunks(blk0)
    else:
        if n_full > 0:
            accumulate_chunks(None)
        # Static remainder (only when td == full D and D % cw != 0).
        rem = td - n_full * cw
        start = n_full * cw
        for _ in range(rem // 128):
            p, t = load(start, 128)
            inter_acc[...] += p * t
            psum_acc[...] += p
            tsum_acc[...] += t
            start += 128
        tail = rem % 128
        if tail:
            p, t = load(start, tail)
            inter_acc[:, 0:1] += jnp.sum(p * t, axis=1, keepdims=True)
            psum_acc[:, 0:1] += jnp.sum(p, axis=1, keepdims=True)
            tsum_acc[:, 0:1] += jnp.sum(t, axis=1, keepdims=True)

    @pl.when(k == pl.num_programs(2) - 1)
    def _finalize():
        inter_ref[0, :, :] = jnp.sum(inter_acc[...], axis=1, keepdims=True)
        psum_ref[0, :, :] = jnp.sum(psum_acc[...], axis=1, keepdims=True)
        tsum_ref[0, :, :] = jnp.sum(tsum_acc[...], axis=1, keepdims=True)


def criterion_dice(pred, target, *, block_elems=1 << 20, interpret=False):
    """Dice loss matching PyTorch CriterionDice.forward (float32 scalar).

    loss = 1 - mean_n[ 2*(sum(sig(p)*t) + 1) / (sum(sig(p)) + sum(t) + 1) ]
    """
    n = target.shape[0]
    if pred.dtype == jnp.bool_:
        pred = pred.astype(jnp.bfloat16)
    if target.dtype == jnp.bool_:
        target = target.astype(jnp.bfloat16)
    pred_flat = pred.reshape(n, -1)        # native dtype, no wrapper upcast
    target_flat = target.reshape(n, -1)
    d = pred_flat.shape[1]

    # ---- sublane fold for small batches ------------------------------------
    # (n, d) -> (n*r, d/r) is a free row-major view; per-sample sums are the
    # sum of r consecutive row sums (recovered in the epilogue).
    r_fold = 1
    if n < 8:
        for r in (8, 4, 2):
            if d % r == 0:
                r_fold = r
                break
    n_eff = n * r_fold
    d_eff = d // r_fold
    pred_flat = pred_flat.reshape(n_eff, d_eff)
    target_flat = target_flat.reshape(n_eff, d_eff)

    # ---- tile selection -----------------------------------------------------
    # N tile: multiple of 8 (or the whole small batch); grow it only when a
    # full-feature-row block still fits the per-buffer budget.
    if n_eff <= 8:
        tn = n_eff
    else:
        tn = 8
        while tn < 64 and 2 * tn <= n_eff and 2 * tn * d_eff <= block_elems:
            tn *= 2
    n_tiles = pl.cdiv(n_eff, tn)

    # Lane-chunk width of the in-kernel loop (~8 vregs per operand per chunk).
    cw = max(128, (1024 // pl.cdiv(tn, 8)) // 128 * 128)

    # D tile: as large as the budget allows (multiple of cw), or the full
    # feature dim when it fits.  Default budget = 1M elems => <=4 MiB per input
    # per buffer at f32, <=16 MiB double-buffered (fits v7x's 64 MiB VMEM).
    td_cap = max(cw, (block_elems // tn) // cw * cw)
    if d_eff <= td_cap:
        if n_tiles == 1 and d_eff >= 2 * cw:
            # Small batch: split D over two parallel partitions so both v7x
            # TensorCores stream half of it (a no-op extra loop on 1-TC chips).
            num_parts = 2
            td = _round_up(pl.cdiv(d_eff, 2), cw)
        else:
            num_parts = 1
            td = d_eff
    else:
        num_parts = 2 if n_tiles == 1 else 1
        if num_parts == 2:
            kpp0 = pl.cdiv(pl.cdiv(d_eff, td_cap), 2)
            td = min(td_cap, _round_up(pl.cdiv(d_eff, 2 * kpp0), cw))
        else:
            td = td_cap

    d_blocks = pl.cdiv(d_eff, td)
    kpp = pl.cdiv(d_blocks, num_parts)
    needs_mask = (num_parts * kpp * td != d_eff)
    clamp = (num_parts * kpp != d_blocks)
    last_block = d_blocks - 1

    if clamp:
        def in_map(p, i, k):
            return (i, jnp.minimum(p * kpp + k, last_block))
    else:
        def in_map(p, i, k):
            return (i, p * kpp + k)

    out_map = lambda p, i, k: (p, i, 0)
    out_spec = pl.BlockSpec((1, tn, 1), out_map)
    out_shape = jax.ShapeDtypeStruct((num_parts, n_eff, 1), jnp.float32)

    kernel = functools.partial(
        _dice_sums_kernel, d_total=d_eff, td=td, tn=tn, cw=cw, kpp=kpp,
        needs_mask=needs_mask)

    inter_p, psum_p, tsum_p = pl.pallas_call(
        kernel,
        out_shape=(out_shape, out_shape, out_shape),
        grid=(num_parts, n_tiles, kpp),
        in_specs=[
            pl.BlockSpec((tn, td), in_map),
            pl.BlockSpec((tn, td), in_map),
        ],
        out_specs=(out_spec, out_spec, out_spec),
        scratch_shapes=[
            pltpu.VMEM((tn, 128), jnp.float32),   # sum(sigmoid(pred)*target)
            pltpu.VMEM((tn, 128), jnp.float32),   # sum(sigmoid(pred))
            pltpu.VMEM((tn, 128), jnp.float32),   # sum(target)
        ],
        compiler_params=pltpu.CompilerParams(
            dimension_semantics=("parallel", "parallel", "arbitrary"),
            vmem_limit_bytes=32 * 1024 * 1024,
        ),
        interpret=interpret,
    )(pred_flat, target_flat)

    # Tiny XLA epilogue: combine D-partition partials, unfold the sublane
    # split, then dice + mean.
    inter = jnp.sum(inter_p, axis=0)[:, 0]
    psum = jnp.sum(psum_p, axis=0)[:, 0]
    tsum = jnp.sum(tsum_p, axis=0)[:, 0]
    if r_fold > 1:
        inter = inter.reshape(n, r_fold).sum(axis=1)
        psum = psum.reshape(n, r_fold).sum(axis=1)
        tsum = tsum.reshape(n, r_fold).sum(axis=1)

    smooth = jnp.float32(1.0)
    dice = 2.0 * (inter + smooth) / (psum + tsum + smooth)
    return 1.0 - jnp.sum(dice) / jnp.float32(n)


def _reference(pred, target):
    # Pure-JAX reference mirroring the PyTorch forward exactly (f32 math).
    n = target.shape[0]
    p = jax.nn.sigmoid(pred.astype(jnp.float32)).reshape(n, -1)
    t = target.astype(jnp.float32).reshape(n, -1)
    inter = jnp.sum(p * t, axis=1)
    dice = 2.0 * (inter + 1.0) / (jnp.sum(p, axis=1) + jnp.sum(t, axis=1) + 1.0)
    return 1.0 - jnp.sum(dice) / n


if __name__ == "__main__":
    key = jax.random.PRNGKey(0)

    def check(pred, target, tol, **kw):
        out = criterion_dice(pred, target, **kw)
        jax.block_until_ready(out)
        ref = _reference(pred, target)
        assert jnp.allclose(out, ref, atol=tol, rtol=tol), (out, ref)

    # 1) canonical small shape: single D block, static 128-wide path.
    k1, k2, key = jax.random.split(key, 3)
    pred = jax.random.normal(k1, (2, 4, 16, 16), dtype=jnp.float32)
    target = (jax.random.uniform(k2, (2, 4, 16, 16)) > 0.5).astype(jnp.float32)
    check(pred, target, 1e-5)

    # 2) bf16 logits streamed natively; exercises the fori chunk loop + <128 tail.
    k1, k2, key = jax.random.split(key, 3)
    pred = jax.random.normal(k1, (2, 4, 32, 36), dtype=jnp.float32).astype(jnp.bfloat16)
    target = (jax.random.uniform(k2, (2, 4, 32, 36)) > 0.5).astype(jnp.float32)
    check(pred, target, 1e-4)

    # 3) small batch with D split across two parallel partitions + masked edge
    #    block (block budget shrunk so small shapes hit the multi-block path).
    k1, k2, key = jax.random.split(key, 3)
    pred = jax.random.normal(k1, (2, 4, 32, 72), dtype=jnp.float32)
    target = (jax.random.uniform(k2, (2, 4, 32, 72)) > 0.5).astype(jnp.bfloat16)
    check(pred, target, 1e-4, block_elems=18432)

    # 4) odd block count over 2 partitions -> clamped, fully-masked extra block.
    k1, k2, key = jax.random.split(key, 3)
    pred = jax.random.normal(k1, (1, 4, 50, 100), dtype=jnp.float32)
    target = (jax.random.uniform(k2, (1, 4, 50, 100)) > 0.5).astype(jnp.float32)
    check(pred, target, 1e-5, block_elems=8192)

    # 5) batch > 8 that is not a multiple of the N tile (partial last N block).
    k1, k2, key = jax.random.split(key, 3)
    pred = jax.random.normal(k1, (10, 3, 8, 8), dtype=jnp.float32)
    target = (jax.random.uniform(k2, (10, 3, 8, 8)) > 0.5).astype(jnp.float32)
    check(pred, target, 1e-5)

    print("KERNEL_OK")
</pallas_src>

<mosaic_0001>
module attributes {stable_mosaic.version = 11 : i64} {
  func.func @_dice_sums_kernel(%arg0: i32, %arg1: i32, %arg2: i32, %arg3: memref<16x128xf32, #tpu.memory_space<vmem>>, %arg4: memref<16x128xf32, #tpu.memory_space<vmem>>, %arg5: memref<1x16x1xf32, #tpu.memory_space<vmem>>, %arg6: memref<1x16x1xf32, #tpu.memory_space<vmem>>, %arg7: memref<1x16x1xf32, #tpu.memory_space<vmem>>, %arg8: memref<16x128xf32, #tpu.memory_space<vmem>>, %arg9: memref<16x128xf32, #tpu.memory_space<vmem>>, %arg10: memref<16x128xf32, #tpu.memory_space<vmem>>) attributes {dimension_semantics = [#tpu.dimension_semantics<parallel>, #tpu.dimension_semantics<parallel>, #tpu.dimension_semantics<arbitrary>], iteration_bounds = array<i64: 1, 1, 1>, scalar_prefetch = 0 : i64, scratch_operands = 3 : i64, tpu.core_type = #tpu.core_type<tc>, window_params = [{transform_indices = @transform_0, window_bounds = array<i64: 16, 128>}, {transform_indices = @transform_1, window_bounds = array<i64: 16, 128>}, {transform_indices = @transform_2, window_bounds = array<i64: 1, 16, 1>}, {transform_indices = @transform_3, window_bounds = array<i64: 1, 16, 1>}, {transform_indices = @transform_4, window_bounds = array<i64: 1, 16, 1>}]} {
    %c0_i32 = arith.constant 0 : i32
    %0 = arith.cmpi eq, %arg2, %c0_i32 : i32
    %1 = arith.extui %0 : i1 to i32
    %c0_i32_0 = arith.constant 0 : i32
    %2 = arith.cmpi ne, %1, %c0_i32_0 : i32
    scf.if %2 {
      %cst_18 = arith.constant 0.000000e+00 : f32
      %23 = vector.broadcast %cst_18 : f32 to vector<16x128xf32>
      %c0_19 = arith.constant 0 : index
      %c0_20 = arith.constant 0 : index
      %24 = vector.load %arg8[%c0_19, %c0_20] : memref<16x128xf32, #tpu.memory_space<vmem>>, vector<16x128xf32>
      tpu.vector_store %arg8[%c0_19, %c0_20], %23 {strides = array<i32>} : memref<16x128xf32, #tpu.memory_space<vmem>>, vector<16x128xf32>,
      %cst_21 = arith.constant 0.000000e+00 : f32
      %25 = vector.broadcast %cst_21 : f32 to vector<16x128xf32>
      %c0_22 = arith.constant 0 : index
      %c0_23 = arith.constant 0 : index
      %26 = vector.load %arg9[%c0_22, %c0_23] : memref<16x128xf32, #tpu.memory_space<vmem>>, vector<16x128xf32>
      tpu.vector_store %arg9[%c0_22, %c0_23], %25 {strides = array<i32>} : memref<16x128xf32, #tpu.memory_space<vmem>>, vector<16x128xf32>,
      %cst_24 = arith.constant 0.000000e+00 : f32
      %27 = vector.broadcast %cst_24 : f32 to vector<16x128xf32>
      %c0_25 = arith.constant 0 : index
      %c0_26 = arith.constant 0 : index
      %28 = vector.load %arg10[%c0_25, %c0_26] : memref<16x128xf32, #tpu.memory_space<vmem>>, vector<16x128xf32>
      tpu.vector_store %arg10[%c0_25, %c0_26], %27 {strides = array<i32>} : memref<16x128xf32, #tpu.memory_space<vmem>>, vector<16x128xf32>,
    } else {
    }
    %c0 = arith.constant 0 : index
    %c0_1 = arith.constant 0 : index
    %3 = vector.load %arg3[%c0, %c0_1] : memref<16x128xf32, #tpu.memory_space<vmem>>, vector<16x128xf32>
    %4 = arith.negf %3 : vector<16x128xf32>
    %5 = math.exp %4 : vector<16x128xf32>
    %cst = arith.constant 1.000000e+00 : f32
    %6 = vector.broadcast %cst : f32 to vector<16x128xf32>
    %7 = arith.addf %6, %5 : vector<16x128xf32>
    %8 = arith.divf %6, %7 : vector<16x128xf32>
    %c0_2 = arith.constant 0 : index
    %c0_3 = arith.constant 0 : index
    %9 = vector.load %arg4[%c0_2, %c0_3] : memref<16x128xf32, #tpu.memory_space<vmem>>, vector<16x128xf32>
    %c0_4 = arith.constant 0 : index
    %c0_5 = arith.constant 0 : index
    %10 = vector.load %arg8[%c0_4, %c0_5] : memref<16x128xf32, #tpu.memory_space<vmem>>, vector<16x128xf32>
    %11 = arith.mulf %8, %9 : vector<16x128xf32>
    %12 = arith.addf %10, %11 : vector<16x128xf32>
    %c0_6 = arith.constant 0 : index
    %c0_7 = arith.constant 0 : index
    %13 = vector.load %arg8[%c0_6, %c0_7] : memref<16x128xf32, #tpu.memory_space<vmem>>, vector<16x128xf32>
    tpu.vector_store %arg8[%c0_6, %c0_7], %12 {strides = array<i32>} : memref<16x128xf32, #tpu.memory_space<vmem>>, vector<16x128xf32>,
    %c0_8 = arith.constant 0 : index
    %c0_9 = arith.constant 0 : index
    %14 = vector.load %arg9[%c0_8, %c0_9] : memref<16x128xf32, #tpu.memory_space<vmem>>, vector<16x128xf32>
    %15 = arith.addf %14, %8 : vector<16x128xf32>
    %c0_10 = arith.constant 0 : index
    %c0_11 = arith.constant 0 : index
    %16 = vector.load %arg9[%c0_10, %c0_11] : memref<16x128xf32, #tpu.memory_space<vmem>>, vector<16x128xf32>
    tpu.vector_store %arg9[%c0_10, %c0_11], %15 {strides = array<i32>} : memref<16x128xf32, #tpu.memory_space<vmem>>, vector<16x128xf32>,
    %c0_12 = arith.constant 0 : index
    %c0_13 = arith.constant 0 : index
    %17 = vector.load %arg10[%c0_12, %c0_13] : memref<16x128xf32, #tpu.memory_space<vmem>>, vector<16x128xf32>
    %18 = arith.addf %17, %9 : vector<16x128xf32>
    %c0_14 = arith.constant 0 : index
    %c0_15 = arith.constant 0 : index
    %19 = vector.load %arg10[%c0_14, %c0_15] : memref<16x128xf32, #tpu.memory_space<vmem>>, vector<16x128xf32>
    tpu.vector_store %arg10[%c0_14, %c0_15], %18 {strides = array<i32>} : memref<16x128xf32, #tpu.memory_space<vmem>>, vector<16x128xf32>,
    %c0_i32_16 = arith.constant 0 : i32
    %20 = arith.cmpi eq, %arg2, %c0_i32_16 : i32
    %21 = arith.extui %20 : i1 to i32
    %c0_i32_17 = arith.constant 0 : i32
    %22 = arith.cmpi ne, %21, %c0_i32_17 : i32
    scf.if %22 {
      %c0_18 = arith.constant 0 : index
      %c0_19 = arith.constant 0 : index
      %23 = vector.load %arg8[%c0_18, %c0_19] : memref<16x128xf32, #tpu.memory_space<vmem>>, vector<16x128xf32>
      %cst_20 = arith.constant dense<0.000000e+00> : vector<16xf32>
      %24 = vector.multi_reduction <add>, %23, %cst_20 [1] : vector<16x128xf32> to vector<16xf32>
      %25 = vector.shape_cast %24 : vector<16xf32> to vector<16x1xf32>
      %c0_21 = arith.constant 0 : index
      %c0_22 = arith.constant 0 : index
      %c0_23 = arith.constant 0 : index
      %26 = vector.load %arg5[%c0_21, %c0_22, %c0_23] : memref<1x16x1xf32, #tpu.memory_space<vmem>>, vector<1x16x1xf32>
      %27 = vector.shape_cast %26 : vector<1x16x1xf32> to vector<16x1xf32>
      %28 = vector.shape_cast %25 : vector<16x1xf32> to vector<1x16x1xf32>
      tpu.vector_store %arg5[%c0_21, %c0_22, %c0_23], %28 {strides = array<i32>} : memref<1x16x1xf32, #tpu.memory_space<vmem>>, vector<1x16x1xf32>,
      %c0_24 = arith.constant 0 : index
      %c0_25 = arith.constant 0 : index
      %29 = vector.load %arg9[%c0_24, %c0_25] : memref<16x128xf32, #tpu.memory_space<vmem>>, vector<16x128xf32>
      %cst_26 = arith.constant dense<0.000000e+00> : vector<16xf32>
      %30 = vector.multi_reduction <add>, %29, %cst_26 [1] : vector<16x128xf32> to vector<16xf32>
      %31 = vector.shape_cast %30 : vector<16xf32> to vector<16x1xf32>
      %c0_27 = arith.constant 0 : index
      %c0_28 = arith.constant 0 : index
      %c0_29 = arith.constant 0 : index
      %32 = vector.load %arg6[%c0_27, %c0_28, %c0_29] : memref<1x16x1xf32, #tpu.memory_space<vmem>>, vector<1x16x1xf32>
      %33 = vector.shape_cast %32 : vector<1x16x1xf32> to vector<16x1xf32>
      %34 = vector.shape_cast %31 : vector<16x1xf32> to vector<1x16x1xf32>
      tpu.vector_store %arg6[%c0_27, %c0_28, %c0_29], %34 {strides = array<i32>} : memref<1x16x1xf32, #tpu.memory_space<vmem>>, vector<1x16x1xf32>,
      %c0_30 = arith.constant 0 : index
      %c0_31 = arith.constant 0 : index
      %35 = vector.load %arg10[%c0_30, %c0_31] : memref<16x128xf32, #tpu.memory_space<vmem>>, vector<16x128xf32>
      %cst_32 = arith.constant dense<0.000000e+00> : vector<16xf32>
      %36 = vector.multi_reduction <add>, %35, %cst_32 [1] : vector<16x128xf32> to vector<16xf32>
      %37 = vector.shape_cast %36 : vector<16xf32> to vector<16x1xf32>
      %c0_33 = arith.constant 0 : index
      %c0_34 = arith.constant 0 : index
      %c0_35 = arith.constant 0 : index
      %38 = vector.load %arg7[%c0_33, %c0_34, %c0_35] : memref<1x16x1xf32, #tpu.memory_space<vmem>>, vector<1x16x1xf32>
      %39 = vector.shape_cast %38 : vector<1x16x1xf32> to vector<16x1xf32>
      %40 = vector.shape_cast %37 : vector<16x1xf32> to vector<1x16x1xf32>
      tpu.vector_store %arg7[%c0_33, %c0_34, %c0_35], %40 {strides = array<i32>} : memref<1x16x1xf32, #tpu.memory_space<vmem>>, vector<1x16x1xf32>,
    } else {
    }
    return
  }
  func.func @transform_0(%arg0: i32, %arg1: i32, %arg2: i32) -> (i32, i32) {
    %c1_i32 = arith.constant 1 : i32
    %0 = arith.muli %arg0, %c1_i32 : i32
    %1 = arith.addi %0, %arg2 : i32
    %c0_i32 = arith.constant 0 : i32
    return %arg1, %1 : i32, i32
  }
  func.func @transform_1(%arg0: i32, %arg1: i32, %arg2: i32) -> (i32, i32) {
    %c1_i32 = arith.constant 1 : i32
    %0 = arith.muli %arg0, %c1_i32 : i32
    %1 = arith.addi %0, %arg2 : i32
    %c0_i32 = arith.constant 0 : i32
    return %arg1, %1 : i32, i32
  }
  func.func @transform_2(%arg0: i32, %arg1: i32, %arg2: i32) -> (i32, i32, i32) {
    %c0_i32 = arith.constant 0 : i32
    %c0_i32_0 = arith.constant 0 : i32
    return %arg0, %arg1, %c0_i32 : i32, i32, i32
  }
  func.func @transform_3(%arg0: i32, %arg1: i32, %arg2: i32) -> (i32, i32, i32) {
    %c0_i32 = arith.constant 0 : i32
    %c0_i32_0 = arith.constant 0 : i32
    return %arg0, %arg1, %c0_i32 : i32, i32, i32
  }
  func.func @transform_4(%arg0: i32, %arg1: i32, %arg2: i32) -> (i32, i32, i32) {
    %c0_i32 = arith.constant 0 : i32
    %c0_i32_0 = arith.constant 0 : i32
    return %arg0, %arg1, %c0_i32 : i32, i32, i32
  }
}

</mosaic_0001>

<llo_original>
// kernel: tpu_custom_call.1
$region0: #{tpu_custom_call.1}
  #allocation0 [shape = 'u32[]', space=smem, size = 0x4, offset = 0x4, fixed_abs, tag = 'smem constant byte address 0x4 - core index']
  #allocation1 [shape = 'u32[144,128]{1,0:T(1,128)}', space=vmem, size = 0x12000, scoped, tag = 'internal scratch']
  #allocation2 [shape = 'f32[16,128]{1,0:T(8,128)}', space=vmem, size = 0x2000, scoped, tag = 'scratch operand']
  #allocation3 [shape = 'f32[16,128]{1,0:T(8,128)}', space=vmem, size = 0x2000, scoped, tag = 'scratch operand']
  #allocation4 [shape = 'f32[16,128]{1,0:T(8,128)}', space=vmem, size = 0x2000, scoped, tag = 'scratch operand']
  %s0 = inlined_call_operand.hbm [shape: f32[16,128], index: 0, kind: input, shape index: {}]
  %s1 = inlined_call_operand.hbm [shape: f32[16,128], index: 1, kind: input, shape index: {}]
  %s2 = inlined_call_operand.vmem [shape: f32[1,16,1], index: 2, kind: output, shape index: {0}]
  %s3 = inlined_call_operand.vmem [shape: f32[1,16,1], index: 3, kind: output, shape index: {1}]
  %s4 = inlined_call_operand.vmem [shape: f32[1,16,1], index: 4, kind: output, shape index: {2}]
  %5 = xla_tuple %s2, %s3, %s4
  %s6 = sld [smem:[#allocation0]]
  $region50: #{tpu_custom_call.1} parent=0
    _
  %s8 = ssub.s32 1, %s6
  %s9 = scalar_select 0, %s8, %s6
  $region1: #{tpu_custom_call.1} parent=0
    #allocation5 [shape = 'u8[8192]{0}', space=vmem, size = 0x2000, scoped, tag = 'input window, operand 0, single buffered']
    #allocation6 [shape = 's32[1]{0}', space=sflag, size = 0x4, scoped, tag = 'scoped memory for tpu_custom_call.1']
    #allocation7 [shape = 'u8[8192]{0}', space=vmem, size = 0x2000, scoped, tag = 'input window, operand 1, single buffered']
    #allocation8 [shape = 's32[1]{0}', space=sflag, size = 0x4, scoped, tag = 'scoped memory for tpu_custom_call.1']
    %10 = vsyncpa [#allocation6], 0
    %11 = vsyncpa [#allocation8], 0
    // Predicated region
    $region2: #{tpu_custom_call.1} parent=1 // pred_check
      _
    $region3: #{tpu_custom_call.1} parent=1 // pred_check_branch
      %13 = sbr.rel (0) target = $region5
    $region4: #{tpu_custom_call.1} parent=1 // pred_region
      %s14 = sadd.s32 0, 0
      %s16 = ssub.s32 256, 256
      %17 = vsyncadd [#allocation6], %s16
      %s18 = smul.addr %s14, 128
      %s19 = scalar_lea.hbm %s0, %s18
      %s20 = sshll.u32 [#allocation5], 4
      %s21 = int_to_ptr.vmem [resolvable:$true] %s20
      %26 = dma.hbm_to_vmem [thread:$0]  %s19, 256, %s21, [#allocation6], 128, 128, 8
    $region5: #{tpu_custom_call.1} parent=1 // pred_fallthru
      _
    // Predicated region
    $region6: #{tpu_custom_call.1} parent=1 // pred_check
      _
    $region7: #{tpu_custom_call.1} parent=1 // pred_check_branch
      %28 = sbr.rel (0) target = $region9
    $region8: #{tpu_custom_call.1} parent=1 // pred_region
      %s29 = sadd.s32 0, 0
      %s31 = ssub.s32 256, 256
      %32 = vsyncadd [#allocation8], %s31
      %s33 = smul.addr %s29, 128
      %s34 = scalar_lea.hbm %s1, %s33
      %s35 = sshll.u32 [#allocation7], 4
      %s36 = int_to_ptr.vmem [resolvable:$true] %s35
      %41 = dma.hbm_to_vmem [thread:$0]  %s34, 256, %s36, [#allocation8], 128, 128, 8
    $region9: #{tpu_custom_call.1} parent=1 // pred_fallthru
      _
    // Predicated region
    $region10: #{tpu_custom_call.1} parent=1 // pred_check
      _
    $region11: #{tpu_custom_call.1} parent=1 // pred_check_branch
      %43 = sbr.rel (0) target = $region13
    $region12: #{tpu_custom_call.1} parent=1 // pred_region
      %44 = dma.done [#allocation6], 256
    $region13: #{tpu_custom_call.1} parent=1 // pred_fallthru
      _
    // Predicated region
    $region14: #{tpu_custom_call.1} parent=1 // pred_check
      _
    $region15: #{tpu_custom_call.1} parent=1 // pred_check_branch
      %46 = sbr.rel (0) target = $region17
    $region16: #{tpu_custom_call.1} parent=1 // pred_region
      %47 = dma.done [#allocation8], 256
    $region17: #{tpu_custom_call.1} parent=1 // pred_fallthru
      _
    %s48 = sadd.s32 0, 0
    %s49 = sadd.s32 0, 0
    %p50 = scmp.eq.s32.totalorder 0, 0
    // Predicated region
    $region18: #{tpu_custom_call.1} parent=1 // pred_check
      %p51 = pneg %p50
    $region19: #{tpu_custom_call.1} parent=1 // pred_check_branch
      %53 = sbr.rel (%p51) target = $region21
    $region20: #{tpu_custom_call.1} parent=1 // pred_region
      %54 = vst [vmem:[#allocation2] sm:$0xff] 0.0
      %55 = vst [vmem:[#allocation2 + $0x8] sm:$0xff] 0.0
      %56 = vst [vmem:[#allocation3] sm:$0xff] 0.0
      %57 = vst [vmem:[#allocation3 + $0x8] sm:$0xff] 0.0
      %58 = vst [vmem:[#allocation4] sm:$0xff] 0.0
      %59 = vst [vmem:[#allocation4 + $0x8] sm:$0xff] 0.0
    $region21: #{tpu_custom_call.1} parent=1 // pred_fallthru
      _
    %v60 = vld [vmem:[#allocation5] sm:$0xff]
    %v61 = vld [vmem:[#allocation5 + $0x8] sm:$0xff]
    %v62 = vxor.u32 %v60, 2147483648
    %v63 = vxor.u32 %v61, 2147483648
    %v64 = vmul.f32 %v62, 1.442695
    %v65 = vpow.pop %v64
    %v66 = vmul.f32 %v63, 1.442695
    %v67 = vpow.pop %v66
    %v68 = vadd.f32 %v65, 1.0
    %v69 = vadd.f32 %v67, 1.0
    %v70 = vrcp.pop %v68
    %v71 = vmul.f32 1.0, %v70
    %v72 = vrcp.pop %v69
    %v73 = vmul.f32 1.0, %v72
    %v74 = vld [vmem:[#allocation7] sm:$0xff]
    %v75 = vld [vmem:[#allocation7 + $0x8] sm:$0xff]
    %v76 = vld [vmem:[#allocation2] sm:$0xff]
    %v77 = vld [vmem:[#allocation2 + $0x8] sm:$0xff]
    %v78 = vmul.f32 %v71, %v74
    %v79 = vmul.f32 %v73, %v75
    %v80 = vadd.f32 %v76, %v78
    %v81 = vadd.f32 %v77, %v79
    %82 = vst [vmem:[#allocation2] sm:$0xff] %v80
    %83 = vst [vmem:[#allocation2 + $0x8] sm:$0xff] %v81
    %v84 = vld [vmem:[#allocation3] sm:$0xff]
    %v85 = vld [vmem:[#allocation3 + $0x8] sm:$0xff]
    %v86 = vadd.f32 %v84, %v71
    %v87 = vadd.f32 %v85, %v73
    %88 = vst [vmem:[#allocation3] sm:$0xff] %v86
    %89 = vst [vmem:[#allocation3 + $0x8] sm:$0xff] %v87
    %v90 = vld [vmem:[#allocation4] sm:$0xff]
    %v91 = vld [vmem:[#allocation4 + $0x8] sm:$0xff]
    %v92 = vadd.f32 %v90, %v74
    %v93 = vadd.f32 %v91, %v75
    %94 = vst [vmem:[#allocation4] sm:$0xff] %v92
    %95 = vst [vmem:[#allocation4 + $0x8] sm:$0xff] %v93
    // Predicated region
    $region22: #{tpu_custom_call.1} parent=1 // pred_check
      %p96 = pneg %p50
    $region23: #{tpu_custom_call.1} parent=1 // pred_check_branch
      %98 = sbr.rel (%p96) target = $region25
    $region24: #{tpu_custom_call.1} parent=1 // pred_region
      %v99 = vld [vmem:[#allocation2] sm:$0xff]
      %v100 = vld [vmem:[#allocation2 + $0x8] sm:$0xff]
      %101 = vadd.xlane.f32.xlu0 %v99
      %v102 = vpop.xlane.xlu0 %101
      %103 = vadd.xlane.f32.xlu0 %v100
      %v104 = vpop.xlane.xlu0 %103
      %vm105 = vcmask 7168
      %106 = vst.msk [vmem:[%s2] sm:$0xff] %vm105, %v102
      %107 = vst.msk [vmem:[%s2 + $0x8] sm:$0xff] %vm105, %v104
      %v108 = vld [vmem:[#allocation3] sm:$0xff]
      %v109 = vld [vmem:[#allocation3 + $0x8] sm:$0xff]
      %110 = vadd.xlane.f32.xlu0 %v108
      %v111 = vpop.xlane.xlu0 %110
      %112 = vadd.xlane.f32.xlu0 %v109
      %v113 = vpop.xlane.xlu0 %112
      %114 = vst.msk [vmem:[%s3] sm:$0xff] %vm105, %v111
      %115 = vst.msk [vmem:[%s3 + $0x8] sm:$0xff] %vm105, %v113
      %v116 = vld [vmem:[#allocation4] sm:$0xff]
      %v117 = vld [vmem:[#allocation4 + $0x8] sm:$0xff]
      %118 = vadd.xlane.f32.xlu0 %v116
      %v119 = vpop.xlane.xlu0 %118
      %120 = vadd.xlane.f32.xlu0 %v117
      %v121 = vpop.xlane.xlu0 %120
      %122 = vst.msk [vmem:[%s4] sm:$0xff] %vm105, %v119
      %123 = vst.msk [vmem:[%s4 + $0x8] sm:$0xff] %vm105, %v121
    $region25: #{tpu_custom_call.1} parent=1 // pred_fallthru
      _
    // Predicated region
    $region26: #{tpu_custom_call.1} parent=1 // pred_check
      _
    $region27: #{tpu_custom_call.1} parent=1 // pred_check_branch
      %125 = sbr.rel (0) target = $region29
    $region28: #{tpu_custom_call.1} parent=1 // pred_region
      _
    $region29: #{tpu_custom_call.1} parent=1 // pred_fallthru
      _
    // Predicated region
    $region30: #{tpu_custom_call.1} parent=1 // pred_check
      _
    $region31: #{tpu_custom_call.1} parent=1 // pred_check_branch
      %127 = sbr.rel (0) target = $region33
    $region32: #{tpu_custom_call.1} parent=1 // pred_region
      _
    $region33: #{tpu_custom_call.1} parent=1 // pred_fallthru
      _
    // Predicated region
    $region34: #{tpu_custom_call.1} parent=1 // pred_check
      _
    $region35: #{tpu_custom_call.1} parent=1 // pred_check_branch
      %129 = sbr.rel (0) target = $region37
    $region36: #{tpu_custom_call.1} parent=1 // pred_region
      _
    $region37: #{tpu_custom_call.1} parent=1 // pred_fallthru
      _
    // Predicated region
    $region38: #{tpu_custom_call.1} parent=1 // pred_check
      _
    $region39: #{tpu_custom_call.1} parent=1 // pred_check_branch
      %131 = sbr.rel (0) target = $region41
    $region40: #{tpu_custom_call.1} parent=1 // pred_region
      _
    $region41: #{tpu_custom_call.1} parent=1 // pred_fallthru
      _
    // Predicated region
    $region42: #{tpu_custom_call.1} parent=1 // pred_check
      _
    $region43: #{tpu_custom_call.1} parent=1 // pred_check_branch
      %133 = sbr.rel (0) target = $region45
    $region44: #{tpu_custom_call.1} parent=1 // pred_region
      _
    $region45: #{tpu_custom_call.1} parent=1 // pred_fallthru
      _
    // Predicated region
    $region46: #{tpu_custom_call.1} parent=1 // pred_check
      _
    $region47: #{tpu_custom_call.1} parent=1 // pred_check_branch
      %135 = sbr.rel (0) target = $region49
    $region48: #{tpu_custom_call.1} parent=1 // pred_region
      _
    $region49: #{tpu_custom_call.1} parent=1 // pred_fallthru
      _
    %136 = vsyncpa [#allocation6], 1
    %137 = vsyncpa [#allocation8], 1

</llo_original>
